<compile_context>
chip_gen: v5e
topology: v5e:2x2
jax: 0.10.0
libtpu: 0.0.40
codegen_flags: <defaults>
</compile_context>

<pallas_src>
import functools

import jax
import jax.numpy as jnp
import numpy as np
from jax import lax
from jax.experimental import pallas as pl
from jax.experimental.pallas import tpu as pltpu


def _sublane_multiple(*dtypes):
    """Dtype-aware sublane multiple: 8 for 32-bit, 16 for 16-bit, 32 for 8-bit."""
    m = 8
    for dt in dtypes:
        bits = jnp.dtype(dt).itemsize * 8
        m = max(m, 256 // bits)
    return m


def _tile_and_pad(rows, max_tile, mult):
    """Pick a legal tile height (multiple of `mult`, or full extent) and the padded
    row count (a multiple of the tile).

    Prefers an exact divisor (no padding).  The old full-extent fallback (which could
    silently blow the scoped VMEM budget) is replaced by padding to a tile multiple;
    the pad copy is bounded and only hit for awkward H*W values.
    """
    max_tile = max(mult, max_tile - (max_tile % mult))
    if rows <= max_tile:
        return rows, rows                      # single full-extent block (always legal)
    for t in range(max_tile, 0, -mult):
        if rows % t == 0:
            return t, rows
    t = max_tile
    return t, -(-rows // t) * t                # rare: pad rows up to a multiple of t


def _pick_chunk_rows(t_rows, mult, max_chunk=32):
    """Sub-chunk height for the in-kernel row loop (bounds the vreg working set)."""
    max_chunk = max(mult, max_chunk - (max_chunk % mult))
    if t_rows <= max_chunk:
        return t_rows
    for cr in range(max_chunk, 0, -mult):
        if t_rows % cr == 0:
            return cr
    return t_rows


# ---------------------------------------------------------------------------
# Kernel 1: per-pixel cross-entropy loss + gt-class softmax probability.
#   logits block: (1, C, t_rows, 128)  — class on the major axis, pixels lane-dense
#   labels block: (1, t_rows, 128) int32
#   outputs     : loss (t_rows,128) f32 (0 for ignored), prob (t_rows,128) (+inf ignored)
# The block is processed in `chunk_rows`-row sub-chunks so the per-chunk working set
# (m/s/gt/lbl/valid) stays a handful of vregs even for multi-MiB DMA tiles.
# ---------------------------------------------------------------------------
def ce_prob_kernel(logits_ref, labels_ref, loss_ref, prob_ref, *,
                   num_classes, ignore_label, chunk_rows):
    t_rows = labels_ref.shape[1]
    n_chunks = t_rows // chunk_rows

    def process(r0):
        rsl = pl.ds(r0, chunk_rows)
        lbl = labels_ref[0, rsl, :]                               # (chunk, 128) int32
        valid = lbl != jnp.int32(ignore_label)
        lbl0 = jnp.where(valid, lbl, 0)                           # ignore -> class 0

        # class-axis max (leading dim => plain elementwise chain over full vregs)
        m = logits_ref[0, 0, rsl, :].astype(jnp.float32)
        for c in range(1, num_classes):
            m = jnp.maximum(m, logits_ref[0, c, rsl, :].astype(jnp.float32))

        # sum of exp + gt-class logit gather (select chain; C is small & static)
        # TODO(synk): on v7x (3.2 TB/s HBM) this exp chain can flip the kernel to
        #             EUP-bound; bf16 exp with f32 accumulate would relieve it at
        #             ~1e-3 relative cost on the logsumexp.
        s = jnp.zeros_like(m)
        gt = jnp.zeros_like(m)
        for c in range(num_classes):
            xc = logits_ref[0, c, rsl, :].astype(jnp.float32)
            s = s + jnp.exp(xc - m)
            gt = jnp.where(lbl0 == c, xc, gt)

        lse = m + jnp.log(s)                                      # logsumexp
        validf = valid.astype(jnp.float32)
        loss_ref[0, rsl, :] = (lse - gt) * validf                 # CE, 0 if ignored
        prob_ref[0, rsl, :] = jnp.where(valid, jnp.exp(gt - lse),
                                        jnp.inf).astype(prob_ref.dtype)

    if n_chunks == 1:
        process(0)                                                # fully static path
    else:
        # Visible loop (not fully unrolled) keeps vreg live ranges bounded per chunk;
        # the kernel is HBM-bound so the scf.for overhead is hidden under the DMA.
        def body(ci, carry):
            process(pl.multiple_of(ci * chunk_rows, chunk_rows))
            return carry
        lax.fori_loop(0, n_chunks, body, 0, unroll=False)


# ---------------------------------------------------------------------------
# Kernel 2: OHEM masked-mean partials given the (data-dependent) threshold.
#   keep = prob < thr   (ignored/padded pixels already have prob = +inf)
# Elementwise running VMEM accumulators; one sublane reduce at the last 'arbitrary'
# step; one partial per entry of the leading 'parallel' axis (2 TCs on v7x).
# ---------------------------------------------------------------------------
def ohem_reduce_kernel(thr_ref, loss_ref, prob_ref, sum_ref, cnt_ref,
                       acc_sum, acc_cnt):
    j = pl.program_id(1)

    @pl.when(j == 0)
    def _():
        acc_sum[...] = jnp.zeros_like(acc_sum)
        acc_cnt[...] = jnp.zeros_like(acc_cnt)

    thr = thr_ref[0]                                              # scalar f32 from SMEM
    keep = (prob_ref[...].astype(jnp.float32) < thr).astype(jnp.float32)
    acc_sum[...] += loss_ref[...] * keep
    acc_cnt[...] += keep

    @pl.when(j == pl.num_programs(1) - 1)
    def _():
        sum_ref[0] = jnp.sum(acc_sum[...], axis=0, keepdims=True)  # (1, 128)
        cnt_ref[0] = jnp.sum(acc_cnt[...], axis=0, keepdims=True)


# ---------------------------------------------------------------------------
# Wrapper (plain-JAX glue: free reshapes, top_k threshold, final division)
# ---------------------------------------------------------------------------
def ohem_ce_loss(logits, labels, *, ignore_label=-1, threshold=0.3, min_kept=1,
                 vmem_budget_bytes=8 * 1024 * 1024, max_tile_rows=1024,
                 reduce_tile_rows=1024, prob_dtype=jnp.float32):
    """OhemCE forward.

    `prob_dtype=jnp.bfloat16` halves the post-softmax HBM traffic (prob write + top_k
    read + reduce read) but can flip keep/drop decisions for probs that tie at the
    threshold vs. an f32 reference, so f32 is the default.
    """
    N, C, H, W = logits.shape
    HW = H * W
    assert HW % 128 == 0, "H*W must be a multiple of 128"
    rows = HW // 128
    min_kept = max(1, min_kept)

    # Contiguous reshapes only (no transpose, no dtype pass over HBM).
    x4 = logits.reshape(N, C, rows, 128)
    lab3 = labels.reshape(N, rows, 128).astype(jnp.int32)

    # ---- kernel-1 tile: as big as the (v5e-safe) VMEM budget allows ----
    # double-buffered logits + labels + loss + prob  <=  2*(C+4)*128*4 bytes per row.
    # Raise vmem_budget_bytes (and pass vmem_limit_bytes) to push further on v6e.
    mult1 = _sublane_multiple(logits.dtype, jnp.int32, jnp.float32, prob_dtype)
    bytes_per_row = 2 * (C + 4) * 128 * 4
    t_max = max(mult1, min(max_tile_rows, vmem_budget_bytes // bytes_per_row))
    t_rows, rows_p = _tile_and_pad(rows, t_max, mult1)
    if rows_p != rows:  # rare awkward-H*W path: pad pixels with ignore_label
        x4 = jnp.pad(x4, ((0, 0), (0, 0), (0, rows_p - rows), (0, 0)))
        lab3 = jnp.pad(lab3, ((0, 0), (0, rows_p - rows), (0, 0)),
                       constant_values=ignore_label)
    n_t = rows_p // t_rows
    chunk_rows = _pick_chunk_rows(t_rows, mult1)

    loss3, prob3 = pl.pallas_call(
        functools.partial(ce_prob_kernel, num_classes=C,
                          ignore_label=ignore_label, chunk_rows=chunk_rows),
        grid=(N, n_t),
        in_specs=[
            pl.BlockSpec((1, C, t_rows, 128), lambda n, t: (n, 0, t, 0)),
            pl.BlockSpec((1, t_rows, 128), lambda n, t: (n, t, 0)),
        ],
        out_specs=[
            pl.BlockSpec((1, t_rows, 128), lambda n, t: (n, t, 0)),
            pl.BlockSpec((1, t_rows, 128), lambda n, t: (n, t, 0)),
        ],
        out_shape=[
            jax.ShapeDtypeStruct((N, rows_p, 128), jnp.float32),
            jax.ShapeDtypeStruct((N, rows_p, 128), prob_dtype),
        ],
        compiler_params=pltpu.CompilerParams(
            dimension_semantics=("parallel", "parallel")),
    )(x4, lab3)

    # ---- OHEM threshold: k-th smallest gt-prob among valid pixels ----
    # Only the k-th smallest value is used, so top_k(min_kept+1) replaces the full
    # sort.  The number of finite entries among those min_kept+1 smallest probs
    # also encodes min(min_kept, n_valid-1), so no P-sized isfinite pass is needed.
    # TODO(synk): for realistic min_kept (~1e5) lax.top_k lowers to a sort-like TopK
    #             that can dominate wall clock; replace with an exact radix/histogram
    #             select over the monotone uint32 bitcast of prob (few streaming passes).
    prob_flat = prob3.reshape(-1)
    k_topk = int(min(min_kept + 1, prob_flat.shape[0]))
    smallest = (-lax.top_k(-prob_flat, k_topk)[0]).astype(jnp.float32)  # ascending
    n_finite = jnp.sum(jnp.isfinite(smallest)).astype(jnp.int32)
    k = jnp.clip(jnp.minimum(jnp.int32(min_kept), n_finite - 1), 0, k_topk - 1)
    thr = jnp.maximum(smallest[k], jnp.float32(threshold)).reshape(1)

    # ---- masked mean of kept losses (lane-dense Pallas reduction) ----
    total_rows = N * rows_p
    loss2 = loss3.reshape(total_rows, 128)
    prob2 = prob3.reshape(total_rows, 128)
    mult2 = _sublane_multiple(jnp.float32, prob_dtype)
    r_rows, total_p = _tile_and_pad(total_rows, reduce_tile_rows, mult2)
    if total_p != total_rows:  # rare awkward-shape path
        loss2 = jnp.pad(loss2, ((0, total_p - total_rows), (0, 0)))
        prob2 = jnp.pad(prob2, ((0, total_p - total_rows), (0, 0)),
                        constant_values=jnp.inf)
    n_blocks = total_p // r_rows
    num_partials = 2 if (n_blocks >= 2 and n_blocks % 2 == 0) else 1
    n_j = n_blocks // num_partials

    s, c = pl.pallas_call(
        ohem_reduce_kernel,
        grid=(num_partials, n_j),
        in_specs=[
            pl.BlockSpec(memory_space=pltpu.MemorySpace.SMEM),
            pl.BlockSpec((r_rows, 128), lambda p, j: (p * n_j + j, 0)),
            pl.BlockSpec((r_rows, 128), lambda p, j: (p * n_j + j, 0)),
        ],
        out_specs=[
            pl.BlockSpec((1, 1, 128), lambda p, j: (p, 0, 0)),
            pl.BlockSpec((1, 1, 128), lambda p, j: (p, 0, 0)),
        ],
        out_shape=[jax.ShapeDtypeStruct((num_partials, 1, 128), jnp.float32)] * 2,
        scratch_shapes=[pltpu.VMEM((r_rows, 128), jnp.float32),
                        pltpu.VMEM((r_rows, 128), jnp.float32)],
        compiler_params=pltpu.CompilerParams(
            dimension_semantics=("parallel", "arbitrary")),
    )(thr, loss2, prob2)

    return jnp.sum(s) / jnp.sum(c)


# ---------------------------------------------------------------------------
# Pure-JAX reference of the PyTorch forward (for verification)
# ---------------------------------------------------------------------------
def ohem_ce_loss_ref(logits, labels, *, ignore_label=-1, threshold=0.3, min_kept=1):
    N, C, H, W = logits.shape
    min_kept = max(1, min_kept)
    x = jnp.transpose(logits, (0, 2, 3, 1)).reshape(-1, C).astype(jnp.float32)
    lab = labels.reshape(-1).astype(jnp.int32)
    valid = lab != ignore_label
    lab0 = jnp.where(valid, lab, 0)
    lse = jax.scipy.special.logsumexp(x, axis=1)
    gt_logit = jnp.take_along_axis(x, lab0[:, None], axis=1)[:, 0]
    loss = jnp.where(valid, lse - gt_logit, 0.0)
    prob = jnp.exp(gt_logit - lse)
    n_valid = jnp.sum(valid).astype(jnp.int32)
    sorted_prob = jnp.sort(jnp.where(valid, prob, jnp.inf))
    k = jnp.minimum(jnp.int32(min_kept), n_valid - 1)
    thr = jnp.maximum(sorted_prob[k], jnp.float32(threshold))
    keep = valid & (prob < thr)
    keep_f = keep.astype(jnp.float32)
    return jnp.sum(loss * keep_f) / jnp.sum(keep_f)


if __name__ == "__main__":
    key = jax.random.PRNGKey(0)
    k1, k2, k3 = jax.random.split(key, 3)

    N, C, H, W = 2, 4, 16, 16
    ignore_label = -1

    logits = jax.random.normal(k1, (N, C, H, W), dtype=jnp.float32)
    labels = jax.random.randint(k2, (N, H, W), 0, C, dtype=jnp.int32)
    # randomly mark ~12.5% of pixels as ignore
    ignore_mask = jax.random.bernoulli(k3, p=0.125, shape=(N, H, W))
    labels = jnp.where(ignore_mask, jnp.int32(ignore_label), labels)

    out = ohem_ce_loss(logits, labels, ignore_label=ignore_label,
                       threshold=0.3, min_kept=1)
    out = jax.block_until_ready(out)

    ref = jax.block_until_ready(
        ohem_ce_loss_ref(logits, labels, ignore_label=ignore_label,
                         threshold=0.3, min_kept=1))

    np.testing.assert_allclose(np.asarray(out), np.asarray(ref),
                               rtol=1e-5, atol=1e-5)
    print("KERNEL_OK")
</pallas_src>

<mosaic_0001>
module attributes {stable_mosaic.version = 11 : i64} {
  func.func @ce_prob_kernel(%arg0: i32, %arg1: i32, %arg2: memref<1x4x2x128xf32, #tpu.memory_space<vmem>>, %arg3: memref<1x2x128xi32, #tpu.memory_space<vmem>>, %arg4: memref<1x2x128xf32, #tpu.memory_space<vmem>>, %arg5: memref<1x2x128xf32, #tpu.memory_space<vmem>>) attributes {dimension_semantics = [#tpu.dimension_semantics<parallel>, #tpu.dimension_semantics<parallel>], iteration_bounds = array<i64: 2, 1>, scalar_prefetch = 0 : i64, scratch_operands = 0 : i64, tpu.core_type = #tpu.core_type<tc>, window_params = [{transform_indices = @transform_0, window_bounds = array<i64: 1, 4, 2, 128>}, {transform_indices = @transform_1, window_bounds = array<i64: 1, 2, 128>}, {transform_indices = @transform_2, window_bounds = array<i64: 1, 2, 128>}, {transform_indices = @transform_3, window_bounds = array<i64: 1, 2, 128>}]} {
    %c0 = arith.constant 0 : index
    %c0_0 = arith.constant 0 : index
    %c0_1 = arith.constant 0 : index
    %0 = vector.load %arg3[%c0, %c0_0, %c0_1] : memref<1x2x128xi32, #tpu.memory_space<vmem>>, vector<1x2x128xi32>
    %1 = vector.shape_cast %0 : vector<1x2x128xi32> to vector<2x128xi32>
    %c-1_i32 = arith.constant -1 : i32
    %2 = vector.broadcast %c-1_i32 : i32 to vector<2x128xi32>
    %3 = arith.cmpi ne, %1, %2 : vector<2x128xi32>
    %c0_i32 = arith.constant 0 : i32
    %4 = vector.broadcast %c0_i32 : i32 to vector<2x128xi32>
    %5 = arith.select %3, %1, %4 : vector<2x128xi1>, vector<2x128xi32>
    %c0_2 = arith.constant 0 : index
    %c0_3 = arith.constant 0 : index
    %c0_4 = arith.constant 0 : index
    %c0_5 = arith.constant 0 : index
    %6 = vector.load %arg2[%c0_2, %c0_3, %c0_4, %c0_5] : memref<1x4x2x128xf32, #tpu.memory_space<vmem>>, vector<1x1x2x128xf32>
    %7 = vector.shape_cast %6 : vector<1x1x2x128xf32> to vector<2x128xf32>
    %c0_6 = arith.constant 0 : index
    %c1 = arith.constant 1 : index
    %c0_7 = arith.constant 0 : index
    %c0_8 = arith.constant 0 : index
    %8 = vector.load %arg2[%c0_6, %c1, %c0_7, %c0_8] : memref<1x4x2x128xf32, #tpu.memory_space<vmem>>, vector<1x1x2x128xf32>
    %9 = vector.shape_cast %8 : vector<1x1x2x128xf32> to vector<2x128xf32>
    %10 = arith.maximumf %7, %9 : vector<2x128xf32>
    %c0_9 = arith.constant 0 : index
    %c2 = arith.constant 2 : index
    %c0_10 = arith.constant 0 : index
    %c0_11 = arith.constant 0 : index
    %11 = vector.load %arg2[%c0_9, %c2, %c0_10, %c0_11] : memref<1x4x2x128xf32, #tpu.memory_space<vmem>>, vector<1x1x2x128xf32>
    %12 = vector.shape_cast %11 : vector<1x1x2x128xf32> to vector<2x128xf32>
    %13 = arith.maximumf %10, %12 : vector<2x128xf32>
    %c0_12 = arith.constant 0 : index
    %c3 = arith.constant 3 : index
    %c0_13 = arith.constant 0 : index
    %c0_14 = arith.constant 0 : index
    %14 = vector.load %arg2[%c0_12, %c3, %c0_13, %c0_14] : memref<1x4x2x128xf32, #tpu.memory_space<vmem>>, vector<1x1x2x128xf32>
    %15 = vector.shape_cast %14 : vector<1x1x2x128xf32> to vector<2x128xf32>
    %16 = arith.maximumf %13, %15 : vector<2x128xf32>
    %cst = arith.constant 0.000000e+00 : f32
    %17 = vector.broadcast %cst : f32 to vector<2x128xf32>
    %cst_15 = arith.constant 0.000000e+00 : f32
    %18 = vector.broadcast %cst_15 : f32 to vector<2x128xf32>
    %c0_16 = arith.constant 0 : index
    %c0_17 = arith.constant 0 : index
    %c0_18 = arith.constant 0 : index
    %c0_19 = arith.constant 0 : index
    %19 = vector.load %arg2[%c0_16, %c0_17, %c0_18, %c0_19] : memref<1x4x2x128xf32, #tpu.memory_space<vmem>>, vector<1x1x2x128xf32>
    %20 = vector.shape_cast %19 : vector<1x1x2x128xf32> to vector<2x128xf32>
    %21 = arith.subf %20, %16 : vector<2x128xf32>
    %22 = math.exp %21 : vector<2x128xf32>
    %23 = arith.addf %17, %22 : vector<2x128xf32>
    %c0_i32_20 = arith.constant 0 : i32
    %24 = vector.broadcast %c0_i32_20 : i32 to vector<2x128xi32>
    %25 = arith.cmpi eq, %5, %24 : vector<2x128xi32>
    %26 = arith.select %25, %20, %18 : vector<2x128xi1>, vector<2x128xf32>
    %c0_21 = arith.constant 0 : index
    %c1_22 = arith.constant 1 : index
    %c0_23 = arith.constant 0 : index
    %c0_24 = arith.constant 0 : index
    %27 = vector.load %arg2[%c0_21, %c1_22, %c0_23, %c0_24] : memref<1x4x2x128xf32, #tpu.memory_space<vmem>>, vector<1x1x2x128xf32>
    %28 = vector.shape_cast %27 : vector<1x1x2x128xf32> to vector<2x128xf32>
    %29 = arith.subf %28, %16 : vector<2x128xf32>
    %30 = math.exp %29 : vector<2x128xf32>
    %31 = arith.addf %23, %30 : vector<2x128xf32>
    %c1_i32 = arith.constant 1 : i32
    %32 = vector.broadcast %c1_i32 : i32 to vector<2x128xi32>
    %33 = arith.cmpi eq, %5, %32 : vector<2x128xi32>
    %34 = arith.select %33, %28, %26 : vector<2x128xi1>, vector<2x128xf32>
    %c0_25 = arith.constant 0 : index
    %c2_26 = arith.constant 2 : index
    %c0_27 = arith.constant 0 : index
    %c0_28 = arith.constant 0 : index
    %35 = vector.load %arg2[%c0_25, %c2_26, %c0_27, %c0_28] : memref<1x4x2x128xf32, #tpu.memory_space<vmem>>, vector<1x1x2x128xf32>
    %36 = vector.shape_cast %35 : vector<1x1x2x128xf32> to vector<2x128xf32>
    %37 = arith.subf %36, %16 : vector<2x128xf32>
    %38 = math.exp %37 : vector<2x128xf32>
    %39 = arith.addf %31, %38 : vector<2x128xf32>
    %c2_i32 = arith.constant 2 : i32
    %40 = vector.broadcast %c2_i32 : i32 to vector<2x128xi32>
    %41 = arith.cmpi eq, %5, %40 : vector<2x128xi32>
    %42 = arith.select %41, %36, %34 : vector<2x128xi1>, vector<2x128xf32>
    %c0_29 = arith.constant 0 : index
    %c3_30 = arith.constant 3 : index
    %c0_31 = arith.constant 0 : index
    %c0_32 = arith.constant 0 : index
    %43 = vector.load %arg2[%c0_29, %c3_30, %c0_31, %c0_32] : memref<1x4x2x128xf32, #tpu.memory_space<vmem>>, vector<1x1x2x128xf32>
    %44 = vector.shape_cast %43 : vector<1x1x2x128xf32> to vector<2x128xf32>
    %45 = arith.subf %44, %16 : vector<2x128xf32>
    %46 = math.exp %45 : vector<2x128xf32>
    %47 = arith.addf %39, %46 : vector<2x128xf32>
    %c3_i32 = arith.constant 3 : i32
    %48 = vector.broadcast %c3_i32 : i32 to vector<2x128xi32>
    %49 = arith.cmpi eq, %5, %48 : vector<2x128xi32>
    %50 = arith.select %49, %44, %42 : vector<2x128xi1>, vector<2x128xf32>
    %51 = math.log %47 : vector<2x128xf32>
    %52 = arith.addf %16, %51 : vector<2x128xf32>
    %53 = arith.extui %3 : vector<2x128xi1> to vector<2x128xi32>
    %54 = arith.sitofp %53 : vector<2x128xi32> to vector<2x128xf32>
    %55 = arith.subf %52, %50 : vector<2x128xf32>
    %56 = arith.mulf %55, %54 : vector<2x128xf32>
    %c0_33 = arith.constant 0 : index
    %c0_34 = arith.constant 0 : index
    %c0_35 = arith.constant 0 : index
    %57 = vector.load %arg4[%c0_33, %c0_34, %c0_35] : memref<1x2x128xf32, #tpu.memory_space<vmem>>, vector<1x2x128xf32>
    %58 = vector.shape_cast %57 : vector<1x2x128xf32> to vector<2x128xf32>
    %59 = vector.shape_cast %56 : vector<2x128xf32> to vector<1x2x128xf32>
    tpu.vector_store %arg4[%c0_33, %c0_34, %c0_35], %59 {strides = array<i32>} : memref<1x2x128xf32, #tpu.memory_space<vmem>>, vector<1x2x128xf32>,
    %60 = arith.subf %50, %52 : vector<2x128xf32>
    %61 = math.exp %60 : vector<2x128xf32>
    %cst_36 = arith.constant 0x7F800000 : f32
    %62 = vector.broadcast %cst_36 : f32 to vector<2x128xf32>
    %63 = arith.select %3, %61, %62 : vector<2x128xi1>, vector<2x128xf32>
    %c0_37 = arith.constant 0 : index
    %c0_38 = arith.constant 0 : index
    %c0_39 = arith.constant 0 : index
    %64 = vector.load %arg5[%c0_37, %c0_38, %c0_39] : memref<1x2x128xf32, #tpu.memory_space<vmem>>, vector<1x2x128xf32>
    %65 = vector.shape_cast %64 : vector<1x2x128xf32> to vector<2x128xf32>
    %66 = vector.shape_cast %63 : vector<2x128xf32> to vector<1x2x128xf32>
    tpu.vector_store %arg5[%c0_37, %c0_38, %c0_39], %66 {strides = array<i32>} : memref<1x2x128xf32, #tpu.memory_space<vmem>>, vector<1x2x128xf32>,
    return
  }
  func.func @transform_0(%arg0: i32, %arg1: i32) -> (i32, i32, i32, i32) {
    %c0_i32 = arith.constant 0 : i32
    %c0_i32_0 = arith.constant 0 : i32
    %c0_i32_1 = arith.constant 0 : i32
    return %arg0, %c0_i32, %arg1, %c0_i32_0 : i32, i32, i32, i32
  }
  func.func @transform_1(%arg0: i32, %arg1: i32) -> (i32, i32, i32) {
    %c0_i32 = arith.constant 0 : i32
    %c0_i32_0 = arith.constant 0 : i32
    return %arg0, %arg1, %c0_i32 : i32, i32, i32
  }
  func.func @transform_2(%arg0: i32, %arg1: i32) -> (i32, i32, i32) {
    %c0_i32 = arith.constant 0 : i32
    %c0_i32_0 = arith.constant 0 : i32
    return %arg0, %arg1, %c0_i32 : i32, i32, i32
  }
  func.func @transform_3(%arg0: i32, %arg1: i32) -> (i32, i32, i32) {
    %c0_i32 = arith.constant 0 : i32
    %c0_i32_0 = arith.constant 0 : i32
    return %arg0, %arg1, %c0_i32 : i32, i32, i32
  }
}

</mosaic_0001>

<llo_original>
// kernel: tpu_custom_call.1
$region0: #{tpu_custom_call.1}
  #allocation0 [shape = 'u32[]', space=smem, size = 0x4, offset = 0x4, fixed_abs, tag = 'smem constant byte address 0x4 - core index']
  #allocation1 [shape = 'u32[72,128]{1,0:T(1,128)}', space=vmem, size = 0x9000, scoped, tag = 'internal scratch']
  %s0 = inlined_call_operand.hbm [shape: f32[2,4,2,128], index: 0, kind: input, shape index: {}]
  %s1 = inlined_call_operand.hbm [shape: s32[2,2,128], index: 1, kind: input, shape index: {}]
  %s2 = inlined_call_operand.hbm [shape: f32[2,2,128], index: 2, kind: output, shape index: {0}]
  %s3 = inlined_call_operand.hbm [shape: f32[2,2,128], index: 3, kind: output, shape index: {1}]
  %4 = xla_tuple %s2, %s3
  %s5 = sld [smem:[#allocation0]]
  $region57: #{tpu_custom_call.1} parent=0
    _
  %s7 = ssub.s32 1, %s5
  %s8 = scalar_select 0, %s7, %s5
  $region1: #{tpu_custom_call.1} parent=0
    #allocation2 [shape = 'u8[8192]{0}', space=vmem, size = 0x2000, scoped, tag = 'input window, operand 0']
    #allocation3 [shape = 's32[2]{0}', space=sflag, size = 0x8, scoped, tag = 'scoped memory for tpu_custom_call.1']
    #allocation4 [shape = 's32[2]{0}', space=sflag, size = 0x8, scoped, tag = 'scoped memory for tpu_custom_call.1']
    #allocation5 [shape = 'u8[2048]{0}', space=vmem, size = 0x800, scoped, tag = 'input window, operand 1']
    #allocation6 [shape = 's32[2]{0}', space=sflag, size = 0x8, scoped, tag = 'scoped memory for tpu_custom_call.1']
    #allocation7 [shape = 'u8[2048]{0}', space=vmem, size = 0x800, scoped, tag = 'output window, operand 0']
    #allocation8 [shape = 'u8[2048]{0}', space=vmem, size = 0x800, scoped, tag = 'output window, operand 1']
    #allocation9 [shape = 's32[2]{0}', space=sflag, size = 0x8, scoped, tag = 'scoped memory for tpu_custom_call.1']
    %9 = vsyncpa [#allocation3], 0
    %s10 = scalar_lea.sflag [#allocation3], 1
    %11 = vsyncpa %s10, 0
    %12 = vsyncpa [#allocation6], 0
    %s13 = scalar_lea.sflag [#allocation6], 1
    %14 = vsyncpa %s13, 0
    %15 = vsyncpa [#allocation4], 0
    %s16 = scalar_lea.sflag [#allocation4], 1
    %17 = vsyncpa %s16, 0
    %18 = vsyncpa [#allocation9], 0
    %s19 = scalar_lea.sflag [#allocation9], 1
    %20 = vsyncpa %s19, 0
    loop: start=0, step=1, limit=4
    $region2: #{tpu_custom_call.1} parent=1 // loop_pre_header
      _
    $region3: #{tpu_custom_call.1} parent=1 // loop_header
      %s22 = sphi 0, %s26
      %p23 = scmp.ge.s32.totalorder %s22, 4
      %s29 = sphi 0, %s41
      %s30 = sphi 0, %s37
      %s31 = sphi 0, %s29
      %s32 = sphi 0, %s30
      %s33 = sphi 0, %s31
      %s34 = sphi 0, %s32
      %s46 = sphi 0, %s48
      %s49 = sphi 0, %s46
      %s50 = sphi 0, %s49
      %s66 = sphi 0, %s50
      %s74 = sphi 0, %s76
      %s77 = sphi 0, %s74
      %s78 = sphi 0, %s77
      %s94 = sphi 0, %s78
      %s102 = sphi 0, %s104
      %s105 = sphi 0, %s102
      %s106 = sphi 0, %s105
      %s122 = sphi 0, %s106
      %s130 = sphi 0, %s132
      %s133 = sphi 0, %s130
      %s134 = sphi 0, %s133
      %s150 = sphi 0, %s134
    $region4: #{tpu_custom_call.1} parent=1 // loop_header_branch
      %25 = sbr.rel (%p23) target = $region8
    $region5: #{tpu_custom_call.1} parent=1 // loop_body
      %s27 = ssub.s32 %s22, 1
      %s28 = ssub.s32 %s22, 2
      %s35 = sadd.s32 1, %s30
      %p36 = scmp.ge.s32.totalorder %s35, 1
      %s37 = scalar_select %p36, 0, %s35
      %s38 = sadd.s32 1, %s29
      %s39 = scalar_select %p36, %s38, %s29
      %p40 = scmp.ge.s32.totalorder %s39, 2
      %s41 = scalar_select %p40, 0, %s39
      %s42 = ssub.s32 %s29, %s41
      %s43 = ssub.s32 %s30, %s37
      %s44 = sor.u32 %s42, %s43
      %p45 = scmp.eq.s32.totalorder %s44, 0
      %s47 = sadd.s32 %s46, 1
      %s48 = scalar_select %p45, %s46, %s47
      %p51 = pneg %p45
      %p52 = scmp.eq.s32.totalorder %s22, 1
      %p53 = por %p51, %p52
      %p54 = scmp.ne.s32.totalorder %s46, %s49
      %p55 = scmp.eq.s32.totalorder %s22, 0
      %p56 = por %p54, %p55
      %p57 = scmp.ne.s32.totalorder %s46, %s49
      %p58 = scmp.eq.s32.totalorder %s27, 1
      %p59 = por %p57, %p58
      %p60 = scmp.ne.s32.totalorder %s49, %s50
      %p61 = scmp.eq.s32.totalorder %s27, 0
      %p62 = por %p60, %p61
      %p63 = scmp.ne.s32.totalorder %s49, %s50
      %p64 = scmp.eq.s32.totalorder %s28, 1
      %p65 = por %p63, %p64
      %p67 = scmp.ne.s32.totalorder %s50, %s66
      %p68 = scmp.eq.s32.totalorder %s28, 0
      %p69 = por %p67, %p68
      %s70 = ssub.s32 %s29, %s41
      %s71 = ssub.s32 %s30, %s37
      %s72 = sor.u32 %s70, %s71
      %p73 = scmp.eq.s32.totalorder %s72, 0
      %s75 = sadd.s32 %s74, 1
      %s76 = scalar_select %p73, %s74, %s75
      %p79 = pneg %p73
      %p80 = scmp.eq.s32.totalorder %s22, 1
      %p81 = por %p79, %p80
      %p82 = scmp.ne.s32.totalorder %s74, %s77
      %p83 = scmp.eq.s32.totalorder %s22, 0
      %p84 = por %p82, %p83
      %p85 = scmp.ne.s32.totalorder %s74, %s77
      %p86 = scmp.eq.s32.totalorder %s27, 1
      %p87 = por %p85, %p86
      %p88 = scmp.ne.s32.totalorder %s77, %s78
      %p89 = scmp.eq.s32.totalorder %s27, 0
      %p90 = por %p88, %p89
      %p91 = scmp.ne.s32.totalorder %s77, %s78
      %p92 = scmp.eq.s32.totalorder %s28, 1
      %p93 = por %p91, %p92
      %p95 = scmp.ne.s32.totalorder %s78, %s94
      %p96 = scmp.eq.s32.totalorder %s28, 0
      %p97 = por %p95, %p96
      %s98 = ssub.s32 %s29, %s41
      %s99 = ssub.s32 %s30, %s37
      %s100 = sor.u32 %s98, %s99
      %p101 = scmp.eq.s32.totalorder %s100, 0
      %s103 = sadd.s32 %s102, 1
      %s104 = scalar_select %p101, %s102, %s103
      %p107 = pneg %p101
      %p108 = scmp.eq.s32.totalorder %s22, 1
      %p109 = por %p107, %p108
      %p110 = scmp.ne.s32.totalorder %s102, %s105
      %p111 = scmp.eq.s32.totalorder %s22, 0
      %p112 = por %p110, %p111
      %p113 = scmp.ne.s32.totalorder %s102, %s105
      %p114 = scmp.eq.s32.totalorder %s27, 1
      %p115 = por %p113, %p114
      %p116 = scmp.ne.s32.totalorder %s105, %s106
      %p117 = scmp.eq.s32.totalorder %s27, 0
      %p118 = por %p116, %p117
      %p119 = scmp.ne.s32.totalorder %s105, %s106
      %p120 = scmp.eq.s32.totalorder %s28, 1
      %p121 = por %p119, %p120
      %p123 = scmp.ne.s32.totalorder %s106, %s122
      %p124 = scmp.eq.s32.totalorder %s28, 0
      %p125 = por %p123, %p124
      %s126 = ssub.s32 %s29, %s41
      %s127 = ssub.s32 %s30, %s37
      %s128 = sor.u32 %s126, %s127
      %p129 = scmp.eq.s32.totalorder %s128, 0
      %s131 = sadd.s32 %s130, 1
      %s132 = scalar_select %p129, %s130, %s131
      %p135 = pneg %p129
      %p136 = scmp.eq.s32.totalorder %s22, 1
      %p137 = por %p135, %p136
      %p138 = scmp.ne.s32.totalorder %s130, %s133
      %p139 = scmp.eq.s32.totalorder %s22, 0
      %p140 = por %p138, %p139
      %p141 = scmp.ne.s32.totalorder %s130, %s133
      %p142 = scmp.eq.s32.totalorder %s27, 1
      %p143 = por %p141, %p142
      %p144 = scmp.ne.s32.totalorder %s133, %s134
      %p145 = scmp.eq.s32.totalorder %s27, 0
      %p146 = por %p144, %p145
      %p147 = scmp.ne.s32.totalorder %s133, %s134
      %p148 = scmp.eq.s32.totalorder %s28, 1
      %p149 = por %p147, %p148
      %p151 = scmp.ne.s32.totalorder %s134, %s150
      %p152 = scmp.eq.s32.totalorder %s28, 0
      %p153 = por %p151, %p152
      %p154 = scmp.le.s32.totalorder 1, %s22
      %p155 = scmp.lt.s32.totalorder %s22, 3
      %p156 = pnand %p154, %p155
      %p157 = pneg %p156
      // Predicated region
      $region9: #{tpu_custom_call.1} parent=5 // pred_check
        _
      $region10: #{tpu_custom_call.1} parent=5 // pred_check_branch
        %159 = sbr.rel (%p156) target = $region12
      $region11: #{tpu_custom_call.1} parent=5 // pred_region
        %s160 = ssub.s32 %s22, 1
      $region12: #{tpu_custom_call.1} parent=5 // pred_fallthru
        _
      %p161 = scmp.lt.s32.totalorder %s22, 2
      // Predicated region
      $region13: #{tpu_custom_call.1} parent=5 // pred_check
        %p162 = pneg %p161
      $region14: #{tpu_custom_call.1} parent=5 // pred_check_branch
        %164 = sbr.rel (%p162) target = $region16
      $region15: #{tpu_custom_call.1} parent=5 // pred_region
        // Predicated region
        $region17: #{tpu_custom_call.1} parent=15 // pred_check
          %p165 = pneg %p56
        $region18: #{tpu_custom_call.1} parent=15 // pred_check_branch
          %167 = sbr.rel (%p165) target = $region20
        $region19: #{tpu_custom_call.1} parent=15 // pred_region
          %s168 = sand.u32 %s46, 1
          %s169 = scalar_lea.sflag [#allocation3], %s168
          %s170 = sand.u32 %s46, 1
          %s171 = smul.addr %s170, 8
          %s172 = scalar_lea.vmem [#allocation2], %s171
          %174 = vsyncadd %s169, 0
          %s175 = smul.addr %s29, 4
          %s176 = sadd.s32 %s30, %s175
          %s177 = smul.addr %s176, 2
          %s178 = scalar_lea.hbm %s0, %s177
          %s179 = sshll.u32 %s178, 4
          %s180 = int_to_ptr.hbm [resolvable:$true] %s179
          %s181 = sshll.u32 %s172, 4
          %s182 = int_to_ptr.vmem [resolvable:$true] %s181
          %187 = dma.hbm_to_vmem [thread:$0]  %s180, 128, %s182, %s169, 32, 32, 2
        $region20: #{tpu_custom_call.1} parent=15 // pred_fallthru
          _
        // Predicated region
        $region21: #{tpu_custom_call.1} parent=15 // pred_check
          %p188 = pneg %p84
        $region22: #{tpu_custom_call.1} parent=15 // pred_check_branch
          %190 = sbr.rel (%p188) target = $region24
        $region23: #{tpu_custom_call.1} parent=15 // pred_region
          %s191 = sand.u32 %s74, 1
          %s192 = scalar_lea.sflag [#allocation6], %s191
          %s193 = sand.u32 %s74, 1
          %s194 = smul.addr %s193, 2
          %s195 = scalar_lea.vmem [#allocation5], %s194
          %197 = vsyncadd %s192, 0
          %s198 = sadd.s32 %s30, %s29
          %s199 = smul.addr %s198, 2
          %s200 = scalar_lea.hbm %s1, %s199
          %s202 = sshll.u32 %s200, 4
          %s203 = int_to_ptr.hbm [resolvable:$true] %s202
          %s204 = sshll.u32 %s195, 4
          %s205 = int_to_ptr.vmem [resolvable:$true] %s204
          %207 = dma.hbm_to_vmem [thread:$0]  %s203, 32, %s205, %s192
        $region24: #{tpu_custom_call.1} parent=15 // pred_fallthru
          _
      $region16: #{tpu_custom_call.1} parent=5 // pred_fallthru
        _
      %p208 = scmp.le.s32.totalorder 1, %s22
      %p209 = scmp.lt.s32.totalorder %s22, 3
      %p210 = pnand %p208, %p209
      %p211 = pneg %p210
      // Predicated region
      $region25: #{tpu_custom_call.1} parent=5 // pred_check
        _
      $region26: #{tpu_custom_call.1} parent=5 // pred_check_branch
        %213 = sbr.rel (%p210) target = $region28
      $region27: #{tpu_custom_call.1} parent=5 // pred_region
        %s214 = ssub.s32 %s22, 1
        %s215 = sand.u32 %s49, 1
        %s216 = scalar_lea.sflag [#allocation3], %s215
        %s217 = sand.u32 %s49, 1
        %s218 = smul.addr %s217, 8
        %s219 = scalar_lea.vmem [#allocation2], %s218
        // Predicated region
        $region29: #{tpu_custom_call.1} parent=27 // pred_check
          %p220 = pneg %p62
        $region30: #{tpu_custom_call.1} parent=27 // pred_check_branch
          %222 = sbr.rel (%p220) target = $region32
        $region31: #{tpu_custom_call.1} parent=27 // pred_region
          %224 = dma.done %s216, 128
        $region32: #{tpu_custom_call.1} parent=27 // pred_fallthru
          _
        %s225 = sand.u32 %s77, 1
        %s226 = scalar_lea.sflag [#allocation6], %s225
        %s227 = sand.u32 %s77, 1
        %s228 = smul.addr %s227, 2
        %s229 = scalar_lea.vmem [#allocation5], %s228
        // Predicated region
        $region33: #{tpu_custom_call.1} parent=27 // pred_check
          %p230 = pneg %p90
        $region34: #{tpu_custom_call.1} parent=27 // pred_check_branch
          %232 = sbr.rel (%p230) target = $region36
        $region35: #{tpu_custom_call.1} parent=27 // pred_region
          %234 = dma.done %s226, 32
        $region36: #{tpu_custom_call.1} parent=27 // pred_fallthru
          _
        %s235 = sand.u32 %s49, 1
        %s236 = scalar_lea.sflag [#allocation3], %s235
        %s237 = sand.u32 %s49, 1
        %s238 = smul.addr %s237, 8
        %s239 = scalar_lea.vmem [#allocation2], %s238
        %p240 = pneg %p62
        %p241 = pneg %p59
        %s242 = sand.u32 %s77, 1
        %s243 = scalar_lea.sflag [#allocation6], %s242
        %s244 = sand.u32 %s77, 1
        %s245 = smul.addr %s244, 2
        %s246 = scalar_lea.vmem [#allocation5], %s245
        %p247 = pneg %p90
        %p248 = pneg %p87
        %p249 = pneg %p118
        %p250 = pneg %p115
        %s251 = sand.u32 %s105, 1
        %s252 = scalar_lea.sflag [#allocation4], %s251
        %s253 = sand.u32 %s105, 1
        %s254 = smul.addr %s253, 2
        %s255 = scalar_lea.vmem [#allocation7], %s254
        %p256 = pneg %p146
        %p257 = pneg %p143
        %s258 = sand.u32 %s133, 1
        %s259 = scalar_lea.sflag [#allocation9], %s258
        %s260 = sand.u32 %s133, 1
        %s261 = smul.addr %s260, 2
        %s262 = scalar_lea.vmem [#allocation8], %s261
        %v263 = vld [vmem:[%s229] sm:$0x3]
        %vm264 = vcmp.ne.s32.totalorder %v263, 4294967295
        %v265 = vsel %vm264, %v263, 0
        %v266 = vld [vmem:[%s219] sm:$0x3]
        %s267 = scalar_lea.vmem %s219, 2 [#allocation2]
        %v268 = vld [vmem:[%s267] sm:$0x3]
        %v269 = vmax.f32 %v266, %v268
        %s270 = scalar_lea.vmem %s219, 4 [#allocation2]
        %v271 = vld [vmem:[%s270] sm:$0x3]
        %v272 = vmax.f32 %v269, %v271
        %s273 = scalar_lea.vmem %s219, 6 [#allocation2]
        %v274 = vld [vmem:[%s273] sm:$0x3]
        %v275 = vmax.f32 %v272, %v274
        %v276 = vsub.f32 %v266, %v275
        %v277 = vmul.f32 %v276, 1.442695
        %v278 = vpow.pop %v277
        %v279 = vadd.f32 %v278, 0.0
        %vm280 = vcmp.eq.s32.totalorder %v265, 0
        %v281 = vsel %vm280, %v266, 0.0
        %v282 = vsub.f32 %v268, %v275
        %v283 = vmul.f32 %v282, 1.442695
        %v284 = vpow.pop %v283
        %v285 = vadd.f32 %v279, %v284
        %vm286 = vcmp.eq.s32.totalorder %v265, 1
        %v287 = vsel %vm286, %v268, %v281
        %v288 = vsub.f32 %v271, %v275
        %v289 = vmul.f32 %v288, 1.442695
        %v290 = vpow.pop %v289
        %v291 = vadd.f32 %v285, %v290
        %vm292 = vcmp.eq.s32.totalorder %v265, 2
        %v293 = vsel %vm292, %v271, %v287
        %v294 = vsub.f32 %v274, %v275
        %v295 = vmul.f32 %v294, 1.442695
        %v296 = vpow.pop %v295
        %v297 = vadd.f32 %v291, %v296
        %vm298 = vcmp.eq.s32.totalorder %v265, 3
        %v299 = vsel %vm298, %v274, %v293
        %v300 = vlog2.pop %v297
        %v301 = vmul.f32 %v300, 0.6931472
        %v302 = vadd.f32 %v275, %v301
        %v303 = vsel %vm264, 1, 0
        %v304 = vcvt.s32.f32 %v303
        %v305 = vsub.f32 %v302, %v299
        %v306 = vmul.f32 %v305, %v304
        %307 = vst [vmem:[%s255] sm:$0x3] %v306
        %v308 = vsub.f32 %v299, %v302
        %v309 = vmul.f32 %v308, 1.442695
        %v310 = vpow.pop %v309
        %v311 = vsel %vm264, %v310, inf
        %312 = vst [vmem:[%s262] sm:$0x3] %v311
        %s313 = sand.u32 %s105, 1
        %s314 = scalar_lea.sflag [#allocation4], %s313
        %s315 = sand.u32 %s105, 1
        %s316 = smul.addr %s315, 2
        %s317 = scalar_lea.vmem [#allocation7], %s316
        %s318 = sand.u32 %s133, 1
        %s319 = scalar_lea.sflag [#allocation9], %s318
        %s320 = sand.u32 %s133, 1
        %s321 = smul.addr %s320, 2
        %s322 = scalar_lea.vmem [#allocation8], %s321
        // Predicated region
        $region37: #{tpu_custom_call.1} parent=27 // pred_check
          %p323 = pneg %p115
        $region38: #{tpu_custom_call.1} parent=27 // pred_check_branch
          %325 = sbr.rel (%p323) target = $region40
        $region39: #{tpu_custom_call.1} parent=27 // pred_region
          %327 = vsyncadd %s314, 0
          %s328 = sadd.s32 %s32, %s31
          %s329 = smul.addr %s328, 2
          %s330 = scalar_lea.hbm %s2, %s329
          %s332 = sshll.u32 %s317, 4
          %s333 = int_to_ptr.vmem [resolvable:$true] %s332
          %s334 = sshll.u32 %s330, 4
          %s335 = int_to_ptr.hbm [resolvable:$true] %s334
          %337 = dma.vmem_to_hbm [thread:$0]  %s333, 32, %s335, %s314
        $region40: #{tpu_custom_call.1} parent=27 // pred_fallthru
          _
        // Predicated region
        $region41: #{tpu_custom_call.1} parent=27 // pred_check
          %p338 = pneg %p143
        $region42: #{tpu_custom_call.1} parent=27 // pred_check_branch
          %340 = sbr.rel (%p338) target = $region44
        $region43: #{tpu_custom_call.1} parent=27 // pred_region
          %342 = vsyncadd %s319, 0
          %s343 = sadd.s32 %s32, %s31
          %s344 = smul.addr %s343, 2
          %s345 = scalar_lea.hbm %s3, %s344
          %s347 = sshll.u32 %s322, 4
          %s348 = int_to_ptr.vmem [resolvable:$true] %s347
          %s349 = sshll.u32 %s345, 4
          %s350 = int_to_ptr.hbm [resolvable:$true] %s349
          %352 = dma.vmem_to_hbm [thread:$0]  %s348, 32, %s350, %s319
        $region44: #{tpu_custom_call.1} parent=27 // pred_fallthru
          _
      $region28: #{tpu_custom_call.1} parent=5 // pred_fallthru
        _
      %p353 = scmp.le.s32.totalorder 2, %s22
      // Predicated region
      $region45: #{tpu_custom_call.1} parent=5 // pred_check
        %p354 = pneg %p353
      $region46: #{tpu_custom_call.1} parent=5 // pred_check_branch
        %356 = sbr.rel (%p354) target = $region48
      $region47: #{tpu_custom_call.1} parent=5 // pred_region
        %s357 = ssub.s32 %s22, 2
        // Predicated region
        $region49: #{tpu_custom_call.1} parent=47 // pred_check
          %p358 = pneg %p121
        $region50: #{tpu_custom_call.1} parent=47 // pred_check_branch
          %360 = sbr.rel (%p358) target = $region52
        $region51: #{tpu_custom_call.1} parent=47 // pred_region
          %s361 = sand.u32 %s106, 1
          %s362 = scalar_lea.sflag [#allocation4], %s361
          %s363 = sand.u32 %s106, 1
          %s364 = smul.addr %s363, 2
          %s365 = scalar_lea.vmem [#allocation7], %s364
          %367 = dma.done %s362, 32
        $region52: #{tpu_custom_call.1} parent=47 // pred_fallthru
          _
        // Predicated region
        $region53: #{tpu_custom_call.1} parent=47 // pred_check
          %p368 = pneg %p149
        $region54: #{tpu_custom_call.1} parent=47 // pred_check_branch
          %370 = sbr.rel (%p368) target = $region56
        $region55: #{tpu_custom_call.1} parent=47 // pred_region
          %s371 = sand.u32 %s134, 1
          %s372 = scalar_lea.sflag [#allocation9], %s371
          %s373 = sand.u32 %s134, 1
          %s374 = smul.addr %s373, 2
          %s375 = scalar_lea.vmem [#allocation8], %s374
          %377 = dma.done %s372, 32
        $region56: #{tpu_custom_call.1} parent=47 // pred_fallthru
          _
      $region48: #{tpu_custom_call.1} parent=5 // pred_fallthru
        _
    $region6: #{tpu_custom_call.1} parent=1 // loop_footer
      %s26 = sadd.s32 1, %s22
    $region7: #{tpu_custom_call.1} parent=1 // loop_footer_branch
      %21 = sbr.rel target = $region3
    $region8: #{tpu_custom_call.1} parent=1 // loop_exit
      _
    %378 = vsyncpa [#allocation3], 1
    %s379 = scalar_lea.sflag [#allocation3], 1
    %380 = vsyncpa %s379, 1
    %381 = vsyncpa [#allocation6], 1
    %s382 = scalar_lea.sflag [#allocation6], 1
    %383 = vsyncpa %s382, 1
    %384 = vsyncpa [#allocation4], 1
    %s385 = scalar_lea.sflag [#allocation4], 1
    %386 = vsyncpa %s385, 1
    %387 = vsyncpa [#allocation9], 1
    %s388 = scalar_lea.sflag [#allocation9], 1
    %389 = vsyncpa %s388, 1

</llo_original>
